<compile_context>
chip_gen: v5e
topology: v5e:2x2
jax: 0.10.0
libtpu: 0.0.40
codegen_flags: <defaults>
</compile_context>

<pallas_src>
import jax
import jax.numpy as jnp
from jax.experimental import pallas as pl
from jax.experimental.pallas import tpu as pltpu

EPSILON = 1e-8
ALPHA = 0.99
REDUCTION = "mean"

_MAX_TILE_ROWS = 1024          # rows per pred tile (upper bound)
_PRED_TILE_BYTES = 2 * 1024 * 1024   # ~2 MiB per pred tile buffer (x2 double-buffer)


def _choose_tile_rows(n_rows, n_classes, itemsize):
    """Pick a row-tile size that keeps the pred tile ~2 MiB and stays legal."""
    t = _PRED_TILE_BYTES // max(1, n_classes * itemsize)
    t = max(8, min(_MAX_TILE_ROWS, int(t)))
    t = (t // 8) * 8                       # sublane multiple of 8
    if n_rows <= t:
        return n_rows                      # full-dim block is always legal
    return t


def _make_kernel(n_rows, tile_rows, tiles_per_split, tf_size, ce_scale, reg_scale):
    def kernel(pred_ref, tgt_ref, tf_ref, out_ref, acc_ref):
        j = pl.program_id(1)               # tile index within this split
        nj = pl.num_programs(1)
        split = pl.program_id(0)

        @pl.when(j == 0)
        def _():
            acc_ref[...] = jnp.zeros_like(acc_ref)

        pred = pred_ref[...].astype(jnp.float32)       # (tile_rows, C)
        tgt = tgt_ref[...]                             # (tile_rows, 1) int32
        tr, n_classes = pred.shape

        # Intended (unclamped) tile index -> global row ids for tail masking.
        tile_idx = split * tiles_per_split + j
        row0 = tile_idx * tile_rows
        row_ids = row0 + jax.lax.broadcasted_iota(jnp.int32, (tr, 1), 0)
        valid = row_ids < n_rows                       # (tile_rows, 1) bool

        # log-softmax pieces (all row-wise lane reductions).
        m = jnp.max(pred, axis=-1, keepdims=True)
        shifted = pred - m
        lse = jnp.log(jnp.sum(jnp.exp(shifted), axis=-1, keepdims=True))
        sum_logp = jnp.sum(shifted, axis=-1, keepdims=True) - n_classes * lse

        # logp at the target class via a masked lane-sum (no (N, C) weights tensor).
        cls_ids = jax.lax.broadcasted_iota(jnp.int32, (tr, n_classes), 1)
        is_tgt = (cls_ids == tgt).astype(jnp.float32)
        logp_t = jnp.sum(is_tgt * shifted, axis=-1, keepdims=True) - lse

        smooth_one = (1.0 - EPSILON) / (n_classes - 1)
        smooth_zero = EPSILON / n_classes
        ce = -(smooth_one * sum_logp + (smooth_zero - smooth_one) * logp_t)
        ce = jnp.where(valid, ce, 0.0)                 # mask pad / duplicated rows

        acc_ref[...] += jnp.sum(ce, keepdims=True)     # (1, 1) accumulator

        @pl.when(j == nj - 1)
        def _():
            # trans_feat is tiny (transform matrix); reduce it once per split.
            tf = tf_ref[...].astype(jnp.float32)
            reg = jnp.sum(tf * tf) * (1.0 / float(tf_size))   # mean(trans_feat**2)
            total = acc_ref[...] * ce_scale + reg * reg_scale  # (1, 1)
            out_ref[...] = jnp.broadcast_to(total.reshape(1, 1, 1), out_ref.shape)

    return kernel


def get_loss(pred, target, trans_feat, reduction=REDUCTION):
    """pred: (B, S, C) float, target: (B, S) int, trans_feat: any-shape float."""
    B, S, C = pred.shape
    n_rows = B * S
    pred2d = pred.reshape(n_rows, C)                   # keep input dtype (bf16 OK)
    target2d = target.reshape(n_rows, 1).astype(jnp.int32)
    tf2d = trans_feat.reshape(1, -1)                   # tiny; kept as one full block
    tf_size = tf2d.size

    tile_rows = _choose_tile_rows(n_rows, C, pred2d.dtype.itemsize)
    num_tiles = pl.cdiv(n_rows, tile_rows)
    num_splits = 2 if num_tiles >= 2 else 1            # v7x megacore row-range split
    tiles_per_split = pl.cdiv(num_tiles, num_splits)

    if reduction == "sum":
        ce_scale = 1.0
        reg_scale = ALPHA * float(n_rows) / num_splits
    else:
        # 'mean' (module default).
        # TODO(synk): reduction='none' returns a per-row vector; this scalar kernel falls back to 'mean'.
        ce_scale = 1.0 / float(n_rows)
        reg_scale = ALPHA / num_splits

    def row_block(split, j):
        # Clamp so the (possibly over-covering) last split never issues an
        # out-of-range block DMA; the duplicated rows are masked in-kernel.
        return (jnp.minimum(split * tiles_per_split + j, num_tiles - 1), 0)

    kernel = _make_kernel(n_rows, tile_rows, tiles_per_split, tf_size,
                          ce_scale, reg_scale)

    out = pl.pallas_call(
        kernel,
        out_shape=jax.ShapeDtypeStruct((num_splits, 8, 128), jnp.float32),
        grid_spec=pltpu.PrefetchScalarGridSpec(
            num_scalar_prefetch=0,
            grid=(num_splits, tiles_per_split),
            in_specs=[
                pl.BlockSpec((tile_rows, C), row_block),          # pred tile
                pl.BlockSpec((tile_rows, 1), row_block),          # target tile
                pl.BlockSpec((1, tf_size), lambda s, j: (0, 0)),  # trans_feat (resident)
            ],
            out_specs=pl.BlockSpec((1, 8, 128), lambda s, j: (s, 0, 0)),
            scratch_shapes=[pltpu.VMEM((1, 1), jnp.float32)],
        ),
        compiler_params=pltpu.CompilerParams(
            dimension_semantics=("parallel", "arbitrary"),
            vmem_limit_bytes=32 * 1024 * 1024,
        ),
    )(pred2d, target2d, tf2d)

    # Tiny cross-split combine (2 partial sums) done by XLA outside the kernel.
    return jnp.sum(out[:, 0, 0])


def _reference(pred, target, trans_feat):
    B, S, C = pred.shape
    p = pred.reshape(-1, C).astype(jnp.float32)
    t = target.reshape(-1)
    one_hot = jax.nn.one_hot(t, C, dtype=jnp.float32)
    smooth_one = (1.0 - EPSILON) / (C - 1)
    smooth_zero = EPSILON / C
    w = one_hot * smooth_zero + (1.0 - one_hot) * smooth_one
    logp = jax.nn.log_softmax(p, axis=-1)
    ce = -jnp.sum(w * logp, axis=-1)
    reg = jnp.mean(trans_feat.astype(jnp.float32) ** 2)
    return jnp.mean(ce + ALPHA * reg)


if __name__ == "__main__":
    key = jax.random.PRNGKey(0)
    k1, k2, k3, k4, k5, k6 = jax.random.split(key, 6)

    # Small case: single tile, single split.
    B, S, C = 2, 8, 16
    pred = jax.random.normal(k1, (B, S, C), dtype=jnp.float32)
    target = jax.random.randint(k2, (B, S), 0, C, dtype=jnp.int32)
    trans_feat = jax.random.normal(k3, (B, 8, 8), dtype=jnp.float32)
    loss = get_loss(pred, target, trans_feat)
    jax.block_until_ready(loss)
    ref = _reference(pred, target, trans_feat)
    assert jnp.allclose(loss, ref, atol=1e-5, rtol=1e-5), (loss, ref)

    # Larger case: exercises the row grid, the 2-way (megacore) split and the
    # masked tail tile.
    B2, S2, C2 = 4, 300, 40
    pred2 = jax.random.normal(k4, (B2, S2, C2), dtype=jnp.float32)
    target2 = jax.random.randint(k5, (B2, S2), 0, C2, dtype=jnp.int32)
    trans_feat2 = jax.random.normal(k6, (B2, 8, 8), dtype=jnp.float32)
    loss2 = get_loss(pred2, target2, trans_feat2)
    jax.block_until_ready(loss2)
    ref2 = _reference(pred2, target2, trans_feat2)
    assert jnp.allclose(loss2, ref2, atol=1e-5, rtol=1e-5), (loss2, ref2)

    print("KERNEL_OK")
</pallas_src>

<mosaic_0001>
module attributes {stable_mosaic.version = 11 : i64} {
  func.func @kernel(%arg0: i32, %arg1: i32, %arg2: memref<16x16xf32, #tpu.memory_space<vmem>>, %arg3: memref<16x1xi32, #tpu.memory_space<vmem>>, %arg4: memref<1x128xf32, #tpu.memory_space<vmem>>, %arg5: memref<1x8x128xf32, #tpu.memory_space<vmem>>, %arg6: memref<1x1xf32, #tpu.memory_space<vmem>>) attributes {dimension_semantics = [#tpu.dimension_semantics<parallel>, #tpu.dimension_semantics<arbitrary>], iteration_bounds = array<i64: 1, 1>, scalar_prefetch = 0 : i64, scratch_operands = 1 : i64, tpu.core_type = #tpu.core_type<tc>, window_params = [{transform_indices = @transform_0, window_bounds = array<i64: 16, 16>}, {transform_indices = @transform_1, window_bounds = array<i64: 16, 1>}, {pipeline_mode = #tpu.pipeline_mode<synchronous>, transform_indices = @transform_2, window_bounds = array<i64: 1, 128>}, {transform_indices = @transform_3, window_bounds = array<i64: 1, 8, 128>}]} {
    %c0_i32 = arith.constant 0 : i32
    %0 = arith.cmpi eq, %arg1, %c0_i32 : i32
    %1 = arith.extui %0 : i1 to i32
    %c0_i32_0 = arith.constant 0 : i32
    %2 = arith.cmpi ne, %1, %c0_i32_0 : i32
    scf.if %2 {
      %cst_20 = arith.constant 0.000000e+00 : f32
      %55 = vector.broadcast %cst_20 : f32 to vector<1x1xf32>
      %c0_21 = arith.constant 0 : index
      %c0_22 = arith.constant 0 : index
      %56 = vector.load %arg6[%c0_21, %c0_22] : memref<1x1xf32, #tpu.memory_space<vmem>>, vector<1x1xf32>
      tpu.vector_store %arg6[%c0_21, %c0_22], %55 {strides = array<i32>} : memref<1x1xf32, #tpu.memory_space<vmem>>, vector<1x1xf32>,
    } else {
    }
    %c0 = arith.constant 0 : index
    %c0_1 = arith.constant 0 : index
    %3 = vector.load %arg2[%c0, %c0_1] : memref<16x16xf32, #tpu.memory_space<vmem>>, vector<16x16xf32>
    %c0_2 = arith.constant 0 : index
    %c0_3 = arith.constant 0 : index
    %4 = vector.load %arg3[%c0_2, %c0_3] : memref<16x1xi32, #tpu.memory_space<vmem>>, vector<16x1xi32>
    %c1_i32 = arith.constant 1 : i32
    %5 = arith.muli %arg0, %c1_i32 : i32
    %6 = arith.addi %5, %arg1 : i32
    %c16_i32 = arith.constant 16 : i32
    %7 = arith.muli %6, %c16_i32 : i32
    %8 = tpu.iota {dimensions = array<i32: 0>} : vector<16x1xi32>
    %9 = vector.broadcast %7 : i32 to vector<16x1xi32>
    %10 = arith.addi %9, %8 : vector<16x1xi32>
    %c16_i32_4 = arith.constant 16 : i32
    %11 = vector.broadcast %c16_i32_4 : i32 to vector<16x1xi32>
    %12 = arith.cmpi slt, %10, %11 : vector<16x1xi32>
    %cst = arith.constant dense<0xFF800000> : vector<16xf32>
    %13 = vector.multi_reduction <maximumf>, %3, %cst [1] : vector<16x16xf32> to vector<16xf32>
    %14 = vector.shape_cast %13 : vector<16xf32> to vector<16x1xf32>
    %15 = vector.broadcast %14 : vector<16x1xf32> to vector<16x16xf32>
    %16 = arith.subf %3, %15 : vector<16x16xf32>
    %17 = math.exp %16 : vector<16x16xf32>
    %cst_5 = arith.constant dense<0.000000e+00> : vector<16xf32>
    %18 = vector.multi_reduction <add>, %17, %cst_5 [1] : vector<16x16xf32> to vector<16xf32>
    %19 = vector.shape_cast %18 : vector<16xf32> to vector<16x1xf32>
    %20 = math.log %19 : vector<16x1xf32>
    %cst_6 = arith.constant dense<0.000000e+00> : vector<16xf32>
    %21 = vector.multi_reduction <add>, %16, %cst_6 [1] : vector<16x16xf32> to vector<16xf32>
    %22 = vector.shape_cast %21 : vector<16xf32> to vector<16x1xf32>
    %cst_7 = arith.constant 1.600000e+01 : f32
    %23 = vector.broadcast %cst_7 : f32 to vector<16x1xf32>
    %24 = arith.mulf %23, %20 : vector<16x1xf32>
    %25 = arith.subf %22, %24 : vector<16x1xf32>
    %26 = tpu.iota {dimensions = array<i32: 1>} : vector<16x16xi32>
    %27 = vector.broadcast %4 : vector<16x1xi32> to vector<16x16xi32>
    %28 = arith.cmpi eq, %26, %27 : vector<16x16xi32>
    %29 = arith.extui %28 : vector<16x16xi1> to vector<16x16xi32>
    %30 = arith.sitofp %29 : vector<16x16xi32> to vector<16x16xf32>
    %31 = arith.mulf %30, %16 : vector<16x16xf32>
    %cst_8 = arith.constant dense<0.000000e+00> : vector<16xf32>
    %32 = vector.multi_reduction <add>, %31, %cst_8 [1] : vector<16x16xf32> to vector<16xf32>
    %33 = vector.shape_cast %32 : vector<16xf32> to vector<16x1xf32>
    %34 = arith.subf %33, %20 : vector<16x1xf32>
    %cst_9 = arith.constant 0.0666666627 : f32
    %35 = vector.broadcast %cst_9 : f32 to vector<16x1xf32>
    %36 = arith.mulf %35, %25 : vector<16x1xf32>
    %cst_10 = arith.constant -0.0666666627 : f32
    %37 = vector.broadcast %cst_10 : f32 to vector<16x1xf32>
    %38 = arith.mulf %37, %34 : vector<16x1xf32>
    %39 = arith.addf %36, %38 : vector<16x1xf32>
    %cst_11 = arith.constant 0.000000e+00 : f32
    %40 = vector.broadcast %cst_11 : f32 to vector<16x1xf32>
    %41 = arith.subf %40, %39 : vector<16x1xf32>
    %cst_12 = arith.constant 0.000000e+00 : f32
    %42 = vector.broadcast %cst_12 : f32 to vector<16x1xf32>
    %43 = arith.select %12, %41, %42 : vector<16x1xi1>, vector<16x1xf32>
    %c0_13 = arith.constant 0 : index
    %c0_14 = arith.constant 0 : index
    %44 = vector.load %arg6[%c0_13, %c0_14] : memref<1x1xf32, #tpu.memory_space<vmem>>, vector<1x1xf32>
    %45 = vector.shape_cast %43 : vector<16x1xf32> to vector<1x16x1xf32>
    %cst_15 = arith.constant dense<0.000000e+00> : vector<1xf32>
    %46 = vector.multi_reduction <add>, %45, %cst_15 [1, 2] : vector<1x16x1xf32> to vector<1xf32>
    %47 = vector.shape_cast %46 : vector<1xf32> to vector<1x1x1xf32>
    %48 = vector.extract %47[0, 0, 0] : f32 from vector<1x1x1xf32>
    %49 = vector.broadcast %48 : f32 to vector<1x1xf32>
    %50 = arith.addf %44, %49 : vector<1x1xf32>
    %c0_16 = arith.constant 0 : index
    %c0_17 = arith.constant 0 : index
    %51 = vector.load %arg6[%c0_16, %c0_17] : memref<1x1xf32, #tpu.memory_space<vmem>>, vector<1x1xf32>
    tpu.vector_store %arg6[%c0_16, %c0_17], %50 {strides = array<i32>} : memref<1x1xf32, #tpu.memory_space<vmem>>, vector<1x1xf32>,
    %c0_i32_18 = arith.constant 0 : i32
    %52 = arith.cmpi eq, %arg1, %c0_i32_18 : i32
    %53 = arith.extui %52 : i1 to i32
    %c0_i32_19 = arith.constant 0 : i32
    %54 = arith.cmpi ne, %53, %c0_i32_19 : i32
    scf.if %54 {
      %c0_20 = arith.constant 0 : index
      %c0_21 = arith.constant 0 : index
      %55 = vector.load %arg4[%c0_20, %c0_21] : memref<1x128xf32, #tpu.memory_space<vmem>>, vector<1x128xf32>
      %56 = arith.mulf %55, %55 : vector<1x128xf32>
      %57 = vector.shape_cast %56 : vector<1x128xf32> to vector<1x1x128xf32>
      %cst_22 = arith.constant dense<0.000000e+00> : vector<1xf32>
      %58 = vector.multi_reduction <add>, %57, %cst_22 [1, 2] : vector<1x1x128xf32> to vector<1xf32>
      %59 = vector.shape_cast %58 : vector<1xf32> to vector<1x1x1xf32>
      %60 = vector.extract %59[0, 0, 0] : f32 from vector<1x1x1xf32>
      %cst_23 = arith.constant 7.812500e-03 : f32
      %61 = arith.mulf %60, %cst_23 : f32
      %c0_24 = arith.constant 0 : index
      %c0_25 = arith.constant 0 : index
      %62 = vector.load %arg6[%c0_24, %c0_25] : memref<1x1xf32, #tpu.memory_space<vmem>>, vector<1x1xf32>
      %cst_26 = arith.constant 6.250000e-02 : f32
      %63 = vector.broadcast %cst_26 : f32 to vector<1x1xf32>
      %64 = arith.mulf %62, %63 : vector<1x1xf32>
      %cst_27 = arith.constant 9.900000e-01 : f32
      %65 = arith.mulf %61, %cst_27 : f32
      %66 = vector.broadcast %65 : f32 to vector<1x1xf32>
      %67 = arith.addf %64, %66 : vector<1x1xf32>
      %68 = vector.shape_cast %67 : vector<1x1xf32> to vector<1x1x1xf32>
      %69 = vector.shape_cast %68 : vector<1x1x1xf32> to vector<1x1x1xf32>
      %70 = vector.broadcast %69 : vector<1x1x1xf32> to vector<1x8x128xf32>
      %c0_28 = arith.constant 0 : index
      %c0_29 = arith.constant 0 : index
      %c0_30 = arith.constant 0 : index
      %71 = vector.load %arg5[%c0_28, %c0_29, %c0_30] : memref<1x8x128xf32, #tpu.memory_space<vmem>>, vector<1x8x128xf32>
      tpu.vector_store %arg5[%c0_28, %c0_29, %c0_30], %70 {strides = array<i32>} : memref<1x8x128xf32, #tpu.memory_space<vmem>>, vector<1x8x128xf32>,
    } else {
    }
    return
  }
  func.func @transform_0(%arg0: i32, %arg1: i32) -> (i32, i32) {
    %c1_i32 = arith.constant 1 : i32
    %0 = arith.muli %arg0, %c1_i32 : i32
    %1 = arith.addi %0, %arg1 : i32
    %c0_i32 = arith.constant 0 : i32
    %2 = arith.minsi %1, %c0_i32 : i32
    %c0_i32_0 = arith.constant 0 : i32
    %c0_i32_1 = arith.constant 0 : i32
    return %2, %c0_i32_0 : i32, i32
  }
  func.func @transform_1(%arg0: i32, %arg1: i32) -> (i32, i32) {
    %c1_i32 = arith.constant 1 : i32
    %0 = arith.muli %arg0, %c1_i32 : i32
    %1 = arith.addi %0, %arg1 : i32
    %c0_i32 = arith.constant 0 : i32
    %2 = arith.minsi %1, %c0_i32 : i32
    %c0_i32_0 = arith.constant 0 : i32
    %c0_i32_1 = arith.constant 0 : i32
    return %2, %c0_i32_0 : i32, i32
  }
  func.func @transform_2(%arg0: i32, %arg1: i32) -> (i32, i32) {
    %c0_i32 = arith.constant 0 : i32
    %c0_i32_0 = arith.constant 0 : i32
    %c0_i32_1 = arith.constant 0 : i32
    return %c0_i32, %c0_i32_0 : i32, i32
  }
  func.func @transform_3(%arg0: i32, %arg1: i32) -> (i32, i32, i32) {
    %c0_i32 = arith.constant 0 : i32
    %c0_i32_0 = arith.constant 0 : i32
    %c0_i32_1 = arith.constant 0 : i32
    return %arg0, %c0_i32, %c0_i32_0 : i32, i32, i32
  }
}

</mosaic_0001>

<llo_original>
// kernel: tpu_custom_call.1
$region0: #{tpu_custom_call.1}
  #allocation0 [shape = 'u32[]', space=smem, size = 0x4, offset = 0x4, fixed_abs, tag = 'smem constant byte address 0x4 - core index']
  #allocation1 [shape = 'u32[72,128]{1,0:T(1,128)}', space=vmem, size = 0x9000, scoped, tag = 'internal scratch']
  #allocation2 [shape = 'f32[1,1]{1,0:T(1,128)}', space=vmem, size = 0x200, scoped, tag = 'scratch operand']
  %s0 = inlined_call_operand.vmem [shape: f32[16,16], index: 0, kind: input, shape index: {}]
  %s1 = inlined_call_operand.vmem [shape: s32[16,1], index: 1, kind: input, shape index: {}]
  %s2 = inlined_call_operand.vmem [shape: f32[1,128], index: 2, kind: input, shape index: {}]
  %s3 = inlined_call_operand.hbm [shape: f32[1,8,128], index: 3, kind: output, shape index: {}]
  %s4 = sld [smem:[#allocation0]]
  $region30: #{tpu_custom_call.1} parent=0
    _
  %s6 = ssub.s32 1, %s4
  %s7 = scalar_select 0, %s6, %s4
  $region1: #{tpu_custom_call.1} parent=0
    #allocation3 [shape = 'u8[4096]{0}', space=vmem, size = 0x1000, scoped, tag = 'output window, operand 0, single buffered']
    #allocation4 [shape = 's32[1]{0}', space=sflag, size = 0x4, scoped, tag = 'scoped memory for tpu_custom_call.1']
    %8 = vsyncpa [#allocation4], 0
    // Predicated region
    $region2: #{tpu_custom_call.1} parent=1 // pred_check
      _
    $region3: #{tpu_custom_call.1} parent=1 // pred_check_branch
      %10 = sbr.rel (0) target = $region5
    $region4: #{tpu_custom_call.1} parent=1 // pred_region
      %s11 = sadd.s32 0, 0
      %p12 = scmp.lt.s32.totalorder %s11, 0
      %s13 = scalar_select %p12, %s11, 0
      %s14 = smul.u32 2, %s13
      %p15 = scmp.lt.s32.totalorder %s14, 1
      %s16 = scalar_select %p15, %s14, 1
      %s17 = smul.addr %s16, 8
      %s18 = scalar_lea.vmem %s0, %s17
      %s19 = sadd.s32 0, 0
      %p20 = scmp.lt.s32.totalorder %s19, 0
      %s21 = scalar_select %p20, %s19, 0
      %s22 = smul.u32 2, %s21
    $region5: #{tpu_custom_call.1} parent=1 // pred_fallthru
      _
    // Predicated region
    $region6: #{tpu_custom_call.1} parent=1 // pred_check
      _
    $region7: #{tpu_custom_call.1} parent=1 // pred_check_branch
      %24 = sbr.rel (0) target = $region9
    $region8: #{tpu_custom_call.1} parent=1 // pred_region
      %s25 = sadd.s32 0, 0
      %p26 = scmp.lt.s32.totalorder %s25, 0
      %s27 = scalar_select %p26, %s25, 0
      %s28 = smul.u32 2, %s27
      %p29 = scmp.lt.s32.totalorder %s28, 1
      %s30 = scalar_select %p29, %s28, 1
      %s31 = smul.addr %s30, 8
      %s32 = scalar_lea.vmem %s1, %s31
      %s33 = sadd.s32 0, 0
      %p34 = scmp.lt.s32.totalorder %s33, 0
      %s35 = scalar_select %p34, %s33, 0
      %s36 = smul.u32 2, %s35
    $region9: #{tpu_custom_call.1} parent=1 // pred_fallthru
      _
    // Predicated region
    $region10: #{tpu_custom_call.1} parent=1 // pred_check
      _
    $region11: #{tpu_custom_call.1} parent=1 // pred_check_branch
      %38 = sbr.rel (0) target = $region13
    $region12: #{tpu_custom_call.1} parent=1 // pred_region
      _
    $region13: #{tpu_custom_call.1} parent=1 // pred_fallthru
      _
    %s39 = sadd.s32 0, 0
    %p40 = scmp.lt.s32.totalorder %s39, 0
    %s41 = scalar_select %p40, %s39, 0
    %s42 = smul.u32 2, %s41
    %p43 = scmp.lt.s32.totalorder %s42, 1
    %s44 = scalar_select %p43, %s42, 1
    %s45 = smul.addr %s44, 8
    %s46 = scalar_lea.vmem %s0, %s45
    %s47 = sadd.s32 0, 0
    %p48 = scmp.lt.s32.totalorder %s47, 0
    %s49 = scalar_select %p48, %s47, 0
    %s50 = smul.u32 2, %s49
    %p51 = scmp.lt.s32.totalorder %s50, 1
    %s52 = scalar_select %p51, %s50, 1
    %s53 = smul.addr %s52, 8
    %s54 = scalar_lea.vmem %s1, %s53
    %s55 = sadd.s32 0, 0
    %p56 = scmp.lt.s32.totalorder %s55, 0
    %s57 = scalar_select %p56, %s55, 0
    %s58 = smul.u32 2, %s57
    %p59 = scmp.lt.s32.totalorder %s58, 1
    %s60 = scalar_select %p59, %s58, 1
    %s61 = smul.addr %s60, 8
    %s62 = scalar_lea.vmem %s0, %s61
    %s63 = sadd.s32 0, 0
    %p64 = scmp.lt.s32.totalorder %s63, 0
    %s65 = scalar_select %p64, %s63, 0
    %s66 = smul.u32 2, %s65
    %s67 = sadd.s32 0, 0
    %p68 = scmp.lt.s32.totalorder %s67, 0
    %s69 = scalar_select %p68, %s67, 0
    %s70 = smul.u32 2, %s69
    %p71 = scmp.lt.s32.totalorder %s70, 1
    %s72 = scalar_select %p71, %s70, 1
    %s73 = smul.addr %s72, 8
    %s74 = scalar_lea.vmem %s1, %s73
    %s75 = sadd.s32 0, 0
    %p76 = scmp.lt.s32.totalorder %s75, 0
    %s77 = scalar_select %p76, %s75, 0
    %s78 = smul.u32 2, %s77
    %p79 = scmp.eq.s32.totalorder 0, 0
    // Predicated region
    $region14: #{tpu_custom_call.1} parent=1 // pred_check
      %p80 = pneg %p79
    $region15: #{tpu_custom_call.1} parent=1 // pred_check_branch
      %82 = sbr.rel (%p80) target = $region17
    $region16: #{tpu_custom_call.1} parent=1 // pred_region
      %vm83 = vcmask 0
      %84 = vst.msk [vmem:[#allocation2] sm:$0x1] %vm83, 0.0
    $region17: #{tpu_custom_call.1} parent=1 // pred_fallthru
      _
    %v85 = vld [vmem:[%s62] sm:$0xff]
    %v86 = vld [vmem:[%s62 + $0x8] sm:$0xff]
    %v87 = vld [vmem:[%s74] sm:$0xff]
    %v88 = vld [vmem:[%s74 + $0x8] sm:$0xff]
    %s89 = sadd.s32 0, 0
    %s90 = smul.u32 %s89, 16
    %v91 = vlaneseq
    %v92 = vshrl.u32 %v91, 7
    %v93 = vadd.s32 %v92, 8
    %v94 = vstv %s90
    %v95 = vadd.s32 %v94, %v92
    %v96 = vadd.s32 %v94, %v93
    %vm97 = vcmp.lt.s32.totalorder %v95, 16
    %vm98 = vcmp.lt.s32.totalorder %v96, 16
    %vm99 = vcmask 130048
    %v100 = vsel %vm99, %v85, -inf
    %101 = vmax.xlane.f32.xlu0 %v100
    %v102 = vpop.xlane.xlu0 %101
    %v103 = vsel %vm99, %v86, -inf
    %104 = vmax.xlane.f32.xlu0 %v103
    %v105 = vpop.xlane.xlu0 %104
    %v106 = vsub.f32 %v85, %v102
    %v107 = vsub.f32 %v86, %v105
    %v108 = vmul.f32 %v106, 1.442695
    %v109 = vpow.pop %v108
    %v110 = vmul.f32 %v107, 1.442695
    %v111 = vpow.pop %v110
    %v112 = vsel %vm99, %v109, 0.0
    %113 = vadd.xlane.f32.xlu0 %v112
    %v114 = vpop.xlane.xlu0 %113
    %v115 = vsel %vm99, %v111, 0.0
    %116 = vadd.xlane.f32.xlu0 %v115
    %v117 = vpop.xlane.xlu0 %116
    %v118 = vlog2.pop %v114
    %v119 = vmul.f32 %v118, 0.6931472
    %v120 = vlog2.pop %v117
    %v121 = vmul.f32 %v120, 0.6931472
    %v122 = vsel %vm99, %v106, 0.0
    %123 = vadd.xlane.f32.xlu0 %v122
    %v124 = vpop.xlane.xlu0 %123
    %v125 = vsel %vm99, %v107, 0.0
    %126 = vadd.xlane.f32.xlu0 %v125
    %v127 = vpop.xlane.xlu0 %126
    %v128 = vmul.f32 %v119, 16.0
    %v129 = vmul.f32 %v121, 16.0
    %v130 = vsub.f32 %v124, %v128
    %v131 = vsub.f32 %v127, %v129
    %v132 = vlaneseq
    %v133 = vand.u32 %v132, 127
    %134 = vset.pattern.permute.xlu0 0
    %135 = vperm.xlu0 %134, %v87
    %v136 = vpop.permute.xlu0 %135
    %137 = vset.pattern.permute.xlu0 0
    %138 = vperm.xlu0 %137, %v88
    %v139 = vpop.permute.xlu0 %138
    %vm140 = vcmp.eq.s32.totalorder %v133, %v136
    %vm141 = vcmp.eq.s32.totalorder %v133, %v139
    %v142 = vsel %vm140, 1, 0
    %v143 = vsel %vm141, 1, 0
    %v144 = vcvt.s32.f32 %v142
    %v145 = vcvt.s32.f32 %v143
    %v146 = vmul.f32 %v144, %v106
    %v147 = vmul.f32 %v145, %v107
    %v148 = vsel %vm99, %v146, 0.0
    %149 = vadd.xlane.f32.xlu0 %v148
    %v150 = vpop.xlane.xlu0 %149
    %v151 = vsel %vm99, %v147, 0.0
    %152 = vadd.xlane.f32.xlu0 %v151
    %v153 = vpop.xlane.xlu0 %152
    %v154 = vsub.f32 %v150, %v119
    %v155 = vsub.f32 %v153, %v121
    %v156 = vmul.f32 %v130, 0.06666666
    %v157 = vmul.f32 %v131, 0.06666666
    %v158 = vmul.f32 %v154, -0.06666666
    %v159 = vmul.f32 %v155, -0.06666666
    %v160 = vadd.f32 %v156, %v158
    %v161 = vadd.f32 %v157, %v159
    %v162 = vsub.f32 0.0, %v160
    %v163 = vsub.f32 0.0, %v161
    %v164 = vsel %vm97, %v162, 0.0
    %v165 = vsel %vm98, %v163, 0.0
    %v166 = vld [vmem:[#allocation2] sm:$0x1]
    %vm167 = vcmask 7168
    %v168 = vsel %vm167, %v164, 0.0
    %v169 = vsel %vm167, %v165, 0.0
    %v170 = vadd.f32 %v168, %v169
    %171 = vadd.xlane.f32.xlu0 %v170
    %v172 = vpop.xlane.xlu0 %171
    %v173 = vrot.slane %v172, 4
    %v174 = vadd.f32 %v172, %v173
    %v175 = vrot.slane %v174, 2
    %v176 = vadd.f32 %v174, %v175
    %v177 = vrot.slane %v176, 1
    %v178 = vadd.f32 %v176, %v177
    %s179 = vtos %v178
    %v180 = vstv %s179
    %v181 = vadd.f32 %v166, %v180
    %vm182 = vcmask 0
    %183 = vst.msk [vmem:[#allocation2] sm:$0x1] %vm182, %v181
    // Predicated region
    $region18: #{tpu_custom_call.1} parent=1 // pred_check
      %p184 = pneg %p79
    $region19: #{tpu_custom_call.1} parent=1 // pred_check_branch
      %186 = sbr.rel (%p184) target = $region21
    $region20: #{tpu_custom_call.1} parent=1 // pred_region
      %v187 = vld [vmem:[%s2] sm:$0x1]
      %v188 = vmul.f32 %v187, %v187
      %vm189 = vcmask 1040384
      %v190 = vsel %vm189, %v188, 0.0
      %191 = vadd.xlane.f32.xlu0 %v190
      %v192 = vpop.xlane.xlu0 %191
      %v193 = vrot.slane %v192, 4
      %v194 = vadd.f32 %v192, %v193
      %v195 = vrot.slane %v194, 2
      %v196 = vadd.f32 %v194, %v195
      %v197 = vrot.slane %v196, 1
      %v198 = vadd.f32 %v196, %v197
      %s199 = vtos %v198
      %s200 = smul.f32 %s199, 0.0078125
      %v201 = vld [vmem:[#allocation2] sm:$0x1]
      %v202 = vmul.f32 %v201, 0.0625
      %s203 = smul.f32 %s200, 0.99
      %v204 = vstv %s203
      %v205 = vadd.f32 %v202, %v204
      %v207 = vperm.slane %v205, 0
      %208 = vset.pattern.permute.xlu0 0
      %209 = vperm.xlu0 %208, %v207
      %v210 = vpop.permute.xlu0 %209
      %212 = vst [vmem:[#allocation3] sm:$0xff] %v210
    $region21: #{tpu_custom_call.1} parent=1 // pred_fallthru
      _
    // Predicated region
    $region22: #{tpu_custom_call.1} parent=1 // pred_check
      _
    $region23: #{tpu_custom_call.1} parent=1 // pred_check_branch
      %214 = sbr.rel (0) target = $region25
    $region24: #{tpu_custom_call.1} parent=1 // pred_region
      %216 = vsyncadd [#allocation4], 0
      %s218 = sshll.u32 [#allocation3], 4
      %s219 = int_to_ptr.vmem [resolvable:$true] %s218
      %s220 = sshll.u32 %s3, 4
      %s221 = int_to_ptr.hbm [resolvable:$true] %s220
      %223 = dma.vmem_to_hbm [thread:$0]  %s219, 128, %s221, [#allocation4]
    $region25: #{tpu_custom_call.1} parent=1 // pred_fallthru
      _
    // Predicated region
    $region26: #{tpu_custom_call.1} parent=1 // pred_check
      _
    $region27: #{tpu_custom_call.1} parent=1 // pred_check_branch
      %225 = sbr.rel (0) target = $region29
    $region28: #{tpu_custom_call.1} parent=1 // pred_region
      %227 = dma.done [#allocation4], 128
    $region29: #{tpu_custom_call.1} parent=1 // pred_fallthru
      _
    %228 = vsyncpa [#allocation4], 1

</llo_original>
